<compile_context>
chip_gen: v7x
topology: tpu7x:2x2x1
jax: 0.10.0
libtpu: 0.0.40
codegen_flags: <defaults>
</compile_context>

<pallas_src>
import functools

import jax
import jax.numpy as jnp
from jax.experimental import pallas as pl
from jax.experimental.pallas import tpu as pltpu


def _round_up(x, m):
    return ((x + m - 1) // m) * m


def _ac_hidden_kernel(x_ref, w1_ref, b1_ref, w2_ref, b2_ref, out_ref):
    """Packed fused heads: tanh(tanh(x @ W1 + b1) @ W2 + b2), one lane-dense store."""
    x = x_ref[...]
    h1 = jnp.tanh(
        jnp.dot(x, w1_ref[...], preferred_element_type=jnp.float32) + b1_ref[...]
    )
    h2 = jnp.tanh(
        jnp.dot(h1, w2_ref[...], preferred_element_type=jnp.float32) + b2_ref[...]
    )
    out_ref[...] = h2.astype(out_ref.dtype)


def _pack_params(params, input_dim, hidden_dim, k_pad, n_pad):
    """Fuse actor/critic weights into one padded weight set (traced XLA ops)."""
    H = hidden_dim
    w1 = jnp.zeros((k_pad, n_pad), jnp.float32)
    w1 = w1.at[:input_dim, 0:H].set(params["w1a"])
    w1 = w1.at[:input_dim, H:2 * H].set(params["w1c"])

    b1 = jnp.zeros((1, n_pad), jnp.float32)
    b1 = b1.at[:, 0:H].set(params["b1a"])
    b1 = b1.at[:, H:2 * H].set(params["b1c"])

    # Block-diagonal layer-2: actor block maps cols [0:H]->[0:H], critic [H:2H]->[H:2H].
    w2 = jnp.zeros((n_pad, n_pad), jnp.float32)
    w2 = w2.at[0:H, 0:H].set(params["w2a"])
    w2 = w2.at[H:2 * H, H:2 * H].set(params["w2c"])

    b2 = jnp.zeros((1, n_pad), jnp.float32)
    b2 = b2.at[:, 0:H].set(params["b2a"])
    b2 = b2.at[:, H:2 * H].set(params["b2c"])
    return w1, b1, w2, b2


@functools.partial(jax.jit, static_argnames=("batch_tile",))
def actor_critic_hidden_forward(observ, params, *, batch_tile=256):
    """observ: [B, input_dim] f32.  params: dict of (in, out) weights, (1, out) biases.

    Returns (actor_hidden, critic_hidden), each [B, hidden_dim] f32.
    """
    B, input_dim = observ.shape
    hidden_dim = params["w2a"].shape[1]

    # Pad contraction / output dims to full lane width (128) and batch to sublanes (8).
    k_pad = _round_up(max(input_dim, 1), 128)
    n_pad = _round_up(max(2 * hidden_dim, 1), 128)
    if B <= batch_tile:
        tb = _round_up(B, 8)
        b_pad = tb
    else:
        tb = _round_up(batch_tile, 8)
        b_pad = _round_up(B, tb)
    grid = (b_pad // tb,)

    # Zero-pad observations (rows and feature columns).
    x = jnp.zeros((b_pad, k_pad), jnp.float32)
    x = x.at[:B, :input_dim].set(observ.astype(jnp.float32))

    w1, b1, w2, b2 = _pack_params(params, input_dim, hidden_dim, k_pad, n_pad)

    packed = pl.pallas_call(
        _ac_hidden_kernel,
        out_shape=jax.ShapeDtypeStruct((b_pad, n_pad), jnp.float32),
        grid=grid,
        in_specs=[
            pl.BlockSpec((tb, k_pad), lambda i: (i, 0)),        # obs tile per grid step
            pl.BlockSpec((k_pad, n_pad), lambda i: (0, 0)),     # weights stay resident
            pl.BlockSpec((1, n_pad), lambda i: (0, 0)),
            pl.BlockSpec((n_pad, n_pad), lambda i: (0, 0)),
            pl.BlockSpec((1, n_pad), lambda i: (0, 0)),
        ],
        out_specs=pl.BlockSpec((tb, n_pad), lambda i: (i, 0)),  # lane-dense packed store
        compiler_params=pltpu.CompilerParams(
            dimension_semantics=("parallel",),                  # 2 TCs on v7x split batch
        ),
    )(x, w1, b1, w2, b2)

    actor_h = packed[:B, 0:hidden_dim]
    critic_h = packed[:B, hidden_dim:2 * hidden_dim]
    return actor_h, critic_h


def _orthogonal(key, shape, gain):
    """Deterministic orthogonal init (openai-baselines style) in plain JAX."""
    rows, cols = shape
    a = jax.random.normal(key, (max(rows, cols), min(rows, cols)), jnp.float32)
    q, r = jnp.linalg.qr(a)
    q = q * jnp.sign(jnp.diag(r))[None, :]
    if rows < cols:
        q = q.T
    return gain * q[:rows, :cols]


def init_params(key, input_dim, hidden_dim):
    """Builds weights transposed to (in, out); biases as (1, out) rows."""
    ks = jax.random.split(key, 4)
    gain = jnp.sqrt(2.0)
    # PyTorch Linear weight is (out, in); we directly build the (in, out) transpose.
    return {
        "w1a": _orthogonal(ks[0], (input_dim, hidden_dim), gain),
        "b1a": jnp.zeros((1, hidden_dim), jnp.float32),
        "w2a": _orthogonal(ks[1], (hidden_dim, hidden_dim), gain),
        "b2a": jnp.zeros((1, hidden_dim), jnp.float32),
        "w1c": _orthogonal(ks[2], (input_dim, hidden_dim), gain),
        "b1c": jnp.zeros((1, hidden_dim), jnp.float32),
        "w2c": _orthogonal(ks[3], (hidden_dim, hidden_dim), gain),
        "b2c": jnp.zeros((1, hidden_dim), jnp.float32),
    }


def _reference(observ, p):
    h = jnp.tanh(observ @ p["w1a"] + p["b1a"])
    actor = jnp.tanh(h @ p["w2a"] + p["b2a"])
    h = jnp.tanh(observ @ p["w1c"] + p["b1c"])
    critic = jnp.tanh(h @ p["w2c"] + p["b2c"])
    return actor, critic


if __name__ == "__main__":
    key = jax.random.PRNGKey(0)
    k_obs, k_param = jax.random.split(key)

    batch, input_dim, hidden_dim = 8, 16, 32
    observ = jax.random.normal(k_obs, (batch, input_dim), jnp.float32)
    params = init_params(k_param, input_dim, hidden_dim)

    actor_h, critic_h = actor_critic_hidden_forward(observ, params)
    jax.block_until_ready((actor_h, critic_h))

    ref_a, ref_c = _reference(observ, params)
    assert actor_h.shape == (batch, hidden_dim)
    assert critic_h.shape == (batch, hidden_dim)
    assert jnp.allclose(actor_h, ref_a, atol=1e-5, rtol=1e-5)
    assert jnp.allclose(critic_h, ref_c, atol=1e-5, rtol=1e-5)

    print("KERNEL_OK")
</pallas_src>

<mosaic_0001>
module attributes {stable_mosaic.version = 11 : i64} {
  func.func @_ac_hidden_kernel(%arg0: i32, %arg1: memref<8x128xf32, #tpu.memory_space<vmem>>, %arg2: memref<128x128xf32, #tpu.memory_space<vmem>>, %arg3: memref<1x128xf32, #tpu.memory_space<vmem>>, %arg4: memref<128x128xf32, #tpu.memory_space<vmem>>, %arg5: memref<1x128xf32, #tpu.memory_space<vmem>>, %arg6: memref<8x128xf32, #tpu.memory_space<vmem>>) attributes {dimension_semantics = [#tpu.dimension_semantics<parallel>], iteration_bounds = array<i64: 1>, scalar_prefetch = 0 : i64, scratch_operands = 0 : i64, tpu.core_type = #tpu.core_type<tc>, window_params = [{transform_indices = @transform_0, window_bounds = array<i64: 8, 128>}, {pipeline_mode = #tpu.pipeline_mode<synchronous>, transform_indices = @transform_1, window_bounds = array<i64: 128, 128>}, {pipeline_mode = #tpu.pipeline_mode<synchronous>, transform_indices = @transform_2, window_bounds = array<i64: 1, 128>}, {pipeline_mode = #tpu.pipeline_mode<synchronous>, transform_indices = @transform_3, window_bounds = array<i64: 128, 128>}, {pipeline_mode = #tpu.pipeline_mode<synchronous>, transform_indices = @transform_4, window_bounds = array<i64: 1, 128>}, {transform_indices = @transform_5, window_bounds = array<i64: 8, 128>}]} {
    %c0 = arith.constant 0 : index
    %c0_0 = arith.constant 0 : index
    %0 = vector.load %arg1[%c0, %c0_0] : memref<8x128xf32, #tpu.memory_space<vmem>>, vector<8x128xf32>
    %c0_1 = arith.constant 0 : index
    %c0_2 = arith.constant 0 : index
    %1 = vector.load %arg2[%c0_1, %c0_2] : memref<128x128xf32, #tpu.memory_space<vmem>>, vector<128x128xf32>
    %cst = arith.constant dense<0.000000e+00> : vector<8x128xf32>
    %2 = tpu.matmul %0, %1, %cst {dimension_numbers = #tpu.dot_dimension_numbers<[1], [0], [0], [1], [0, 0, 1, 1], [], []>} : vector<8x128xf32>, vector<128x128xf32>, vector<8x128xf32> -> vector<8x128xf32>
    %c0_3 = arith.constant 0 : index
    %c0_4 = arith.constant 0 : index
    %3 = vector.load %arg3[%c0_3, %c0_4] : memref<1x128xf32, #tpu.memory_space<vmem>>, vector<1x128xf32>
    %4 = vector.broadcast %3 : vector<1x128xf32> to vector<8x128xf32>
    %5 = arith.addf %2, %4 : vector<8x128xf32>
    %6 = math.tanh %5 : vector<8x128xf32>
    %c0_5 = arith.constant 0 : index
    %c0_6 = arith.constant 0 : index
    %7 = vector.load %arg4[%c0_5, %c0_6] : memref<128x128xf32, #tpu.memory_space<vmem>>, vector<128x128xf32>
    %cst_7 = arith.constant dense<0.000000e+00> : vector<8x128xf32>
    %8 = tpu.matmul %6, %7, %cst_7 {dimension_numbers = #tpu.dot_dimension_numbers<[1], [0], [0], [1], [0, 0, 1, 1], [], []>} : vector<8x128xf32>, vector<128x128xf32>, vector<8x128xf32> -> vector<8x128xf32>
    %c0_8 = arith.constant 0 : index
    %c0_9 = arith.constant 0 : index
    %9 = vector.load %arg5[%c0_8, %c0_9] : memref<1x128xf32, #tpu.memory_space<vmem>>, vector<1x128xf32>
    %10 = vector.broadcast %9 : vector<1x128xf32> to vector<8x128xf32>
    %11 = arith.addf %8, %10 : vector<8x128xf32>
    %12 = math.tanh %11 : vector<8x128xf32>
    %c0_10 = arith.constant 0 : index
    %c0_11 = arith.constant 0 : index
    %13 = vector.load %arg6[%c0_10, %c0_11] : memref<8x128xf32, #tpu.memory_space<vmem>>, vector<8x128xf32>
    tpu.vector_store %arg6[%c0_10, %c0_11], %12 {strides = array<i32>} : memref<8x128xf32, #tpu.memory_space<vmem>>, vector<8x128xf32>,
    return
  }
  func.func @transform_0(%arg0: i32) -> (i32, i32) {
    %c0_i32 = arith.constant 0 : i32
    %c0_i32_0 = arith.constant 0 : i32
    return %arg0, %c0_i32 : i32, i32
  }
  func.func @transform_1(%arg0: i32) -> (i32, i32) {
    %c0_i32 = arith.constant 0 : i32
    %c0_i32_0 = arith.constant 0 : i32
    %c0_i32_1 = arith.constant 0 : i32
    return %c0_i32, %c0_i32_0 : i32, i32
  }
  func.func @transform_2(%arg0: i32) -> (i32, i32) {
    %c0_i32 = arith.constant 0 : i32
    %c0_i32_0 = arith.constant 0 : i32
    %c0_i32_1 = arith.constant 0 : i32
    return %c0_i32, %c0_i32_0 : i32, i32
  }
  func.func @transform_3(%arg0: i32) -> (i32, i32) {
    %c0_i32 = arith.constant 0 : i32
    %c0_i32_0 = arith.constant 0 : i32
    %c0_i32_1 = arith.constant 0 : i32
    return %c0_i32, %c0_i32_0 : i32, i32
  }
  func.func @transform_4(%arg0: i32) -> (i32, i32) {
    %c0_i32 = arith.constant 0 : i32
    %c0_i32_0 = arith.constant 0 : i32
    %c0_i32_1 = arith.constant 0 : i32
    return %c0_i32, %c0_i32_0 : i32, i32
  }
  func.func @transform_5(%arg0: i32) -> (i32, i32) {
    %c0_i32 = arith.constant 0 : i32
    %c0_i32_0 = arith.constant 0 : i32
    return %arg0, %c0_i32 : i32, i32
  }
}

</mosaic_0001>

<llo_original>
// kernel: actor_critic_hidden_forward.1
$region0: #{actor_critic_hidden_forward.1}
  #allocation0 [shape = 'u32[]', space=smem, size = 0x4, offset = 0x4, fixed_abs, tag = 'smem constant byte address 0x4 - core index']
  #allocation1 [shape = 'u32[144,128]{1,0:T(1,128)}', space=vmem, size = 0x12000, scoped, tag = 'internal scratch']
  %s0 = inlined_call_operand.vmem [shape: f32[8,128], index: 0, kind: input, shape index: {}]
  %s1 = inlined_call_operand.vmem [shape: f32[128,128], index: 1, kind: input, shape index: {}]
  %s2 = inlined_call_operand.vmem [shape: f32[1,128], index: 2, kind: input, shape index: {}]
  %s3 = inlined_call_operand.vmem [shape: f32[128,128], index: 3, kind: input, shape index: {}]
  %s4 = inlined_call_operand.vmem [shape: f32[1,128], index: 4, kind: input, shape index: {}]
  %s5 = inlined_call_operand.vmem [shape: f32[8,128], index: 5, kind: output, shape index: {}]
  %s6 = sld [smem:[#allocation0]]
  $region30: #{actor_critic_hidden_forward.1} parent=0
    _
  %s8 = ssub.s32 1, %s6
  %s9 = scalar_select 0, %s8, %s6
  // Predicated region
  $region2: #{actor_critic_hidden_forward.1} parent=0 // pred_check
    _
  $region3: #{actor_critic_hidden_forward.1} parent=0 // pred_check_branch
    %11 = sbr.rel (0) target = $region5
  $region4: #{actor_critic_hidden_forward.1} parent=0 // pred_region
    _
  $region5: #{actor_critic_hidden_forward.1} parent=0 // pred_fallthru
    _
  // Predicated region
  $region6: #{actor_critic_hidden_forward.1} parent=0 // pred_check
    _
  $region7: #{actor_critic_hidden_forward.1} parent=0 // pred_check_branch
    %13 = sbr.rel (0) target = $region9
  $region8: #{actor_critic_hidden_forward.1} parent=0 // pred_region
    _
  $region9: #{actor_critic_hidden_forward.1} parent=0 // pred_fallthru
    _
  // Predicated region
  $region10: #{actor_critic_hidden_forward.1} parent=0 // pred_check
    _
  $region11: #{actor_critic_hidden_forward.1} parent=0 // pred_check_branch
    %15 = sbr.rel (0) target = $region13
  $region12: #{actor_critic_hidden_forward.1} parent=0 // pred_region
    _
  $region13: #{actor_critic_hidden_forward.1} parent=0 // pred_fallthru
    _
  // Predicated region
  $region14: #{actor_critic_hidden_forward.1} parent=0 // pred_check
    _
  $region15: #{actor_critic_hidden_forward.1} parent=0 // pred_check_branch
    %17 = sbr.rel (0) target = $region17
  $region16: #{actor_critic_hidden_forward.1} parent=0 // pred_region
    _
  $region17: #{actor_critic_hidden_forward.1} parent=0 // pred_fallthru
    _
  // Predicated region
  $region18: #{actor_critic_hidden_forward.1} parent=0 // pred_check
    _
  $region19: #{actor_critic_hidden_forward.1} parent=0 // pred_check_branch
    %19 = sbr.rel (0) target = $region21
  $region20: #{actor_critic_hidden_forward.1} parent=0 // pred_region
    _
  $region21: #{actor_critic_hidden_forward.1} parent=0 // pred_fallthru
    _
  %v20 = vld [vmem:[%s0] sm:$0xff]
  %v21 = vld [vmem:[%s1] sm:$0xff]
  %v22 = vld [vmem:[%s1 + $0x8] sm:$0xff]
  %v23 = vld [vmem:[%s1 + $0x10] sm:$0xff]
  %v24 = vld [vmem:[%s1 + $0x18] sm:$0xff]
  %v25 = vld [vmem:[%s1 + $0x20] sm:$0xff]
  %v26 = vld [vmem:[%s1 + $0x28] sm:$0xff]
  %v27 = vld [vmem:[%s1 + $0x30] sm:$0xff]
  %v28 = vld [vmem:[%s1 + $0x38] sm:$0xff]
  %v29 = vld [vmem:[%s1 + $0x40] sm:$0xff]
  %v30 = vld [vmem:[%s1 + $0x48] sm:$0xff]
  %v31 = vld [vmem:[%s1 + $0x50] sm:$0xff]
  %v32 = vld [vmem:[%s1 + $0x58] sm:$0xff]
  %v33 = vld [vmem:[%s1 + $0x60] sm:$0xff]
  %v34 = vld [vmem:[%s1 + $0x68] sm:$0xff]
  %v35 = vld [vmem:[%s1 + $0x70] sm:$0xff]
  %v36 = vld [vmem:[%s1 + $0x78] sm:$0xff]
  %v37 = vld [vmem:[%s2] sm:$0x1]
  %v39 = vlaneseq
  %v40 = vshrl.u32 %v39, 7
  %v41 = vsub.s32 0, %v40
  %v42 = vrot.slane %v37, %v41
  %44 = vmatprep.subr.mxu0 0.0
  %45 = vmatpush1.msra.mxu0 %v21
  %46 = vmatprep.subr.mxu0 0.0
  %47 = vmatpush1.msra.mxu0 %v22
  %48 = vmatprep.subr.mxu0 0.0
  %49 = vmatpush1.msra.mxu0 %v23
  %50 = vmatprep.subr.mxu0 0.0
  %51 = vmatpush1.msra.mxu0 %v24
  %52 = vmatprep.subr.mxu0 0.0
  %53 = vmatpush1.msra.mxu0 %v25
  %54 = vmatprep.subr.mxu0 0.0
  %55 = vmatpush1.msra.mxu0 %v26
  %56 = vmatprep.subr.mxu0 0.0
  %57 = vmatpush1.msra.mxu0 %v27
  %58 = vmatprep.subr.mxu0 0.0
  %59 = vmatpush1.msra.mxu0 %v28
  %60 = vmatprep.subr.mxu0 0.0
  %61 = vmatpush1.msra.mxu0 %v29
  %62 = vmatprep.subr.mxu0 0.0
  %63 = vmatpush1.msra.mxu0 %v30
  %64 = vmatprep.subr.mxu0 0.0
  %65 = vmatpush1.msra.mxu0 %v31
  %66 = vmatprep.subr.mxu0 0.0
  %67 = vmatpush1.msra.mxu0 %v32
  %68 = vmatprep.subr.mxu0 0.0
  %69 = vmatpush1.msra.mxu0 %v33
  %70 = vmatprep.subr.mxu0 0.0
  %71 = vmatpush1.msra.mxu0 %v34
  %72 = vmatprep.subr.mxu0 0.0
  %73 = vmatpush1.msra.mxu0 %v35
  %74 = vmatprep.subr.mxu0 0.0
  %75 = vmatpush1.msra.mxu0 %v36
  %76 = vmatprep.subr.mxu0 0.0
  %77 = vmatpush1.msra.mxu0 0.0
  %78 = vmatprep.subr.mxu0 0.0
  %79 = vmatpush1.msra.mxu0 0.0
  %80 = vmatprep.subr.mxu0 0.0
  %81 = vmatpush1.msra.mxu0 0.0
  %82 = vmatprep.subr.mxu0 0.0
  %83 = vmatpush1.msra.mxu0 0.0
  %84 = vmatprep.subr.mxu0 0.0
  %85 = vmatpush1.msra.mxu0 0.0
  %86 = vmatprep.subr.mxu0 0.0
  %87 = vmatpush1.msra.mxu0 0.0
  %88 = vmatprep.subr.mxu0 0.0
  %89 = vmatpush1.msra.mxu0 0.0
  %90 = vmatprep.subr.mxu0 0.0
  %91 = vmatpush1.msra.mxu0 0.0
  %92 = vmatprep.subr.mxu0 0.0
  %93 = vmatpush1.msra.mxu0 0.0
  %94 = vmatprep.subr.mxu0 0.0
  %95 = vmatpush1.msra.mxu0 0.0
  %96 = vmatprep.subr.mxu0 0.0
  %97 = vmatpush1.msra.mxu0 0.0
  %98 = vmatprep.subr.mxu0 0.0
  %99 = vmatpush1.msra.mxu0 0.0
  %100 = vmatprep.subr.mxu0 0.0
  %101 = vmatpush1.msra.mxu0 0.0
  %102 = vmatprep.subr.mxu0 0.0
  %103 = vmatpush1.msra.mxu0 0.0
  %104 = vmatprep.subr.mxu0 0.0
  %105 = vmatpush1.msra.mxu0 0.0
  %106 = vmatprep.subr.mxu0 0.0
  %107 = vmatpush1.msra.mxu0 0.0
  %108 = vmatprep.mubr.f32.mxu0 0.0
  %109 = vmatmul.mubr.f32.gmra.mrb[0].mxu0 %v20
  %v110 = vpop.f32.mrb[0].mxu0
  %v111 = vadd.f32 %v42, %v110
  %v112 = vpop.f32.mrb[0].mxu0
  %113 = vdwg.mxu0
  %v114 = vtanh.pop %v111
  %v115 = vld [vmem:[%s3] sm:$0xff]
  %v116 = vld [vmem:[%s3 + $0x8] sm:$0xff]
  %v117 = vld [vmem:[%s3 + $0x10] sm:$0xff]
  %v118 = vld [vmem:[%s3 + $0x18] sm:$0xff]
  %v119 = vld [vmem:[%s3 + $0x20] sm:$0xff]
  %v120 = vld [vmem:[%s3 + $0x28] sm:$0xff]
  %v121 = vld [vmem:[%s3 + $0x30] sm:$0xff]
  %v122 = vld [vmem:[%s3 + $0x38] sm:$0xff]
  %v123 = vld [vmem:[%s3 + $0x40] sm:$0xff]
  %v124 = vld [vmem:[%s3 + $0x48] sm:$0xff]
  %v125 = vld [vmem:[%s3 + $0x50] sm:$0xff]
  %v126 = vld [vmem:[%s3 + $0x58] sm:$0xff]
  %v127 = vld [vmem:[%s3 + $0x60] sm:$0xff]
  %v128 = vld [vmem:[%s3 + $0x68] sm:$0xff]
  %v129 = vld [vmem:[%s3 + $0x70] sm:$0xff]
  %v130 = vld [vmem:[%s3 + $0x78] sm:$0xff]
  %v131 = vld [vmem:[%s4] sm:$0x1]
  %v133 = vlaneseq
  %v134 = vshrl.u32 %v133, 7
  %v135 = vsub.s32 0, %v134
  %v136 = vrot.slane %v131, %v135
  %138 = vmatprep.subr.mxu0 0.0
  %139 = vmatpush1.msra.mxu0 %v115
  %140 = vmatprep.subr.mxu0 0.0
  %141 = vmatpush1.msra.mxu0 %v116
  %142 = vmatprep.subr.mxu0 0.0
  %143 = vmatpush1.msra.mxu0 %v117
  %144 = vmatprep.subr.mxu0 0.0
  %145 = vmatpush1.msra.mxu0 %v118
  %146 = vmatprep.subr.mxu0 0.0
  %147 = vmatpush1.msra.mxu0 %v119
  %148 = vmatprep.subr.mxu0 0.0
  %149 = vmatpush1.msra.mxu0 %v120
  %150 = vmatprep.subr.mxu0 0.0
  %151 = vmatpush1.msra.mxu0 %v121
  %152 = vmatprep.subr.mxu0 0.0
  %153 = vmatpush1.msra.mxu0 %v122
  %154 = vmatprep.subr.mxu0 0.0
  %155 = vmatpush1.msra.mxu0 %v123
  %156 = vmatprep.subr.mxu0 0.0
  %157 = vmatpush1.msra.mxu0 %v124
  %158 = vmatprep.subr.mxu0 0.0
  %159 = vmatpush1.msra.mxu0 %v125
  %160 = vmatprep.subr.mxu0 0.0
  %161 = vmatpush1.msra.mxu0 %v126
  %162 = vmatprep.subr.mxu0 0.0
  %163 = vmatpush1.msra.mxu0 %v127
  %164 = vmatprep.subr.mxu0 0.0
  %165 = vmatpush1.msra.mxu0 %v128
  %166 = vmatprep.subr.mxu0 0.0
  %167 = vmatpush1.msra.mxu0 %v129
  %168 = vmatprep.subr.mxu0 0.0
  %169 = vmatpush1.msra.mxu0 %v130
  %170 = vmatprep.subr.mxu0 0.0
  %171 = vmatpush1.msra.mxu0 0.0
  %172 = vmatprep.subr.mxu0 0.0
  %173 = vmatpush1.msra.mxu0 0.0
  %174 = vmatprep.subr.mxu0 0.0
  %175 = vmatpush1.msra.mxu0 0.0
  %176 = vmatprep.subr.mxu0 0.0
  %177 = vmatpush1.msra.mxu0 0.0
  %178 = vmatprep.subr.mxu0 0.0
  %179 = vmatpush1.msra.mxu0 0.0
  %180 = vmatprep.subr.mxu0 0.0
  %181 = vmatpush1.msra.mxu0 0.0
  %182 = vmatprep.subr.mxu0 0.0
  %183 = vmatpush1.msra.mxu0 0.0
  %184 = vmatprep.subr.mxu0 0.0
  %185 = vmatpush1.msra.mxu0 0.0
  %186 = vmatprep.subr.mxu0 0.0
  %187 = vmatpush1.msra.mxu0 0.0
  %188 = vmatprep.subr.mxu0 0.0
  %189 = vmatpush1.msra.mxu0 0.0
  %190 = vmatprep.subr.mxu0 0.0
  %191 = vmatpush1.msra.mxu0 0.0
  %192 = vmatprep.subr.mxu0 0.0
  %193 = vmatpush1.msra.mxu0 0.0
  %194 = vmatprep.subr.mxu0 0.0
  %195 = vmatpush1.msra.mxu0 0.0
  %196 = vmatprep.subr.mxu0 0.0
  %197 = vmatpush1.msra.mxu0 0.0
  %198 = vmatprep.subr.mxu0 0.0
  %199 = vmatpush1.msra.mxu0 0.0
  %200 = vmatprep.subr.mxu0 0.0
  %201 = vmatpush1.msra.mxu0 0.0
  %202 = vmatprep.mubr.f32.mxu0 0.0
  %203 = vmatmul.mubr.f32.gmra.mrb[0].mxu0 %v114
  %v204 = vpop.f32.mrb[0].mxu0
  %v205 = vadd.f32 %v136, %v204
  %v206 = vpop.f32.mrb[0].mxu0
  %207 = vdwg.mxu0
  %v208 = vtanh.pop %v205
  %209 = vst [vmem:[%s5] sm:$0xff] %v208
  // Predicated region
  $region22: #{actor_critic_hidden_forward.1} parent=0 // pred_check
    _
  $region23: #{actor_critic_hidden_forward.1} parent=0 // pred_check_branch
    %211 = sbr.rel (0) target = $region25
  $region24: #{actor_critic_hidden_forward.1} parent=0 // pred_region
    _
  $region25: #{actor_critic_hidden_forward.1} parent=0 // pred_fallthru
    _
  // Predicated region
  $region26: #{actor_critic_hidden_forward.1} parent=0 // pred_check
    _
  $region27: #{actor_critic_hidden_forward.1} parent=0 // pred_check_branch
    %213 = sbr.rel (0) target = $region29
  $region28: #{actor_critic_hidden_forward.1} parent=0 // pred_region
    _
  $region29: #{actor_critic_hidden_forward.1} parent=0 // pred_fallthru
    _

</llo_original>
